<compile_context>
chip_gen: v7x
topology: tpu7x:2x2x1
jax: 0.10.0
libtpu: 0.0.40
codegen_flags: <defaults>
</compile_context>

<pallas_src>
import jax
import jax.numpy as jnp
from jax.experimental import pallas as pl
from jax.experimental.pallas import tpu as pltpu


def _leaky_relu(x, slope=0.1):
    # slope < 1  =>  max(x, slope*x) == leaky_relu(x); 2 VPU ops, no select.
    return jnp.maximum(x, x * slope)


def value_net_kernel(x_ref,
                     w1_ref, b1_ref,
                     w2_ref, b2_ref,
                     w3_ref, b3_ref,
                     w4_ref, b4_ref,
                     o_ref):
    # x tile arrives in its HBM dtype (f32) and is cast to bf16 on-core, so the
    # wrapper never does a separate HBM cast pass.
    x = x_ref[...].astype(jnp.bfloat16)

    # fc1..fc3: bf16 MXU inputs, f32 accumulation, then a single cast to bf16
    # for the bias add + activation (which also feeds the next MXU dot).
    h = jnp.dot(x, w1_ref[...], preferred_element_type=jnp.float32)
    h = _leaky_relu(h.astype(jnp.bfloat16) + b1_ref[...])

    h = jnp.dot(h, w2_ref[...], preferred_element_type=jnp.float32)
    h = _leaky_relu(h.astype(jnp.bfloat16) + b2_ref[...])

    h = jnp.dot(h, w3_ref[...], preferred_element_type=jnp.float32)
    h = _leaky_relu(h.astype(jnp.bfloat16) + b3_ref[...])

    # fc4 head (128 -> 1): VPU multiply + lane reduction (an Mx128x1 matmul
    # would waste ~127/128 of the MXU).  w4 is kept f32 so the product /
    # reduction accumulate in f32.
    y = jnp.sum(h * w4_ref[...], axis=-1, keepdims=True) + b4_ref[...]
    o_ref[...] = y.astype(o_ref.dtype)


def _round_up(n, m):
    return -(-n // m) * m


def _choose_tile(B, batch_tile):
    """Pick the batch tile TB (rows per grid step).

    * Small batches: one full-extent tile (block dim == array dim is always
      layout-legal, and no rows are wasted).
    * Large batches: an even number of tiles >= 2 (feeds both TCs on v7x),
      each at most ~batch_tile rows, rounded up to 16 rows so bf16 sublane
      pairs stay full.  Waste in the last (partial) tile is < 16 rows.
    """
    if B <= min(256, batch_tile):
        return B
    n_tiles = max(2, 2 * pl.cdiv(pl.cdiv(B, batch_tile), 2))
    return _round_up(pl.cdiv(B, n_tiles), 16)


def value_network_forward(x, params, *, batch_tile=2048):
    """x: (B, in_dim) f32 -> (B,) f32 (matches the torch forward + squeeze(1))."""
    w1, b1, w2, b2, w3, b3, w4, b4 = params
    B, in_dim = x.shape
    hidden = w1.shape[1]

    TB = _choose_tile(B, batch_tile)
    grid = (pl.cdiv(B, TB),)

    # Weight / bias operands: tiny, VMEM-resident across the whole grid.
    w1_bf = w1.astype(jnp.bfloat16)
    w2_bf = w2.astype(jnp.bfloat16)
    w3_bf = w3.astype(jnp.bfloat16)
    b1_bf = b1.astype(jnp.bfloat16)
    b2_bf = b2.astype(jnp.bfloat16)
    b3_bf = b3.astype(jnp.bfloat16)
    w4_row = w4.reshape(1, hidden).astype(jnp.float32)   # head as a lane row
    b4_sc = b4.reshape(1, 1).astype(jnp.float32)

    def resident(shape):
        return pl.BlockSpec(shape, lambda i: (0, 0))      # constant block index

    # Right-sized VMEM reservation: streamed x (double-buffered) + a handful of
    # per-layer f32/bf16 intermediates + ~100 KiB of weights, with slack.
    row_bytes = max(in_dim, hidden) * 4
    vmem_limit = int(min(64 << 20, max(4 << 20, 10 * TB * row_bytes + (2 << 20))))

    flops = B * (2 * in_dim * hidden + 2 * 2 * hidden * hidden + 2 * hidden)
    bytes_accessed = (B * in_dim * 4                               # x (f32, single read)
                      + (in_dim * hidden + 2 * hidden * hidden) * 2  # w1..w3 bf16
                      + 3 * hidden * 2 + (hidden + 1) * 4            # biases + head
                      + B * 4)                                        # output

    y = pl.pallas_call(
        value_net_kernel,
        out_shape=jax.ShapeDtypeStruct((B, 1), jnp.float32),
        grid=grid,
        in_specs=[
            pl.BlockSpec((TB, in_dim), lambda i: (i, 0)),  # streamed activations
            resident((in_dim, hidden)), resident((1, hidden)),
            resident((hidden, hidden)), resident((1, hidden)),
            resident((hidden, hidden)), resident((1, hidden)),
            resident((1, hidden)), resident((1, 1)),
        ],
        out_specs=pl.BlockSpec((TB, 1), lambda i: (i, 0)),
        compiler_params=pltpu.CompilerParams(
            dimension_semantics=("parallel",),
            vmem_limit_bytes=vmem_limit),
        cost_estimate=pl.CostEstimate(
            flops=flops, transcendentals=0, bytes_accessed=bytes_accessed),
    )(x, w1_bf, b1_bf, w2_bf, b2_bf, w3_bf, b3_bf, w4_row, b4_sc)

    return y[:, 0]   # squeeze(1); partial-tile garbage never reaches HBM


def init_params(key, in_dim=128, hidden=128):
    """Deterministic synthetic init (uniform, torch-Linear-like fan_in bound).

    Weights stored as (in, out) so the kernel computes x @ W + b, equivalent
    to torch's x @ W.T + b.
    """
    ks = jax.random.split(key, 8)

    def lin(kw, kb, fan_in, fan_out):
        bound = 1.0 / jnp.sqrt(fan_in)
        w = jax.random.uniform(kw, (fan_in, fan_out), jnp.float32, -bound, bound)
        b = jax.random.uniform(kb, (1, fan_out), jnp.float32, -bound, bound)
        return w, b

    w1, b1 = lin(ks[0], ks[1], in_dim, hidden)
    w2, b2 = lin(ks[2], ks[3], hidden, hidden)
    w3, b3 = lin(ks[4], ks[5], hidden, hidden)
    w4, b4 = lin(ks[6], ks[7], hidden, 1)
    return (w1, b1, w2, b2, w3, b3, w4, b4)


def reference_forward(x, params):
    """Pure-JAX f32 reference of the torch forward pass."""
    (w1, b1, w2, b2, w3, b3, w4, b4) = params
    h = jax.nn.leaky_relu(x @ w1 + b1, negative_slope=0.1)
    h = jax.nn.leaky_relu(h @ w2 + b2, negative_slope=0.1)
    h = jax.nn.leaky_relu(h @ w3 + b3, negative_slope=0.1)
    y = h @ w4 + b4
    return y[:, 0]


if __name__ == "__main__":
    key = jax.random.PRNGKey(0)
    k_params, k_x1, k_x2 = jax.random.split(key, 3)

    in_dim, hidden = 128, 128
    params = init_params(k_params, in_dim=in_dim, hidden=hidden)

    # Small batch: single full-extent tile, grid=(1,).
    x1 = jax.random.normal(k_x1, (8, in_dim), dtype=jnp.float32)
    y1 = jax.block_until_ready(value_network_forward(x1, params))
    assert y1.shape == (8,)
    # Tolerance loosened for bf16 MXU inputs / bf16 elementwise (f32 accumulation).
    assert jnp.allclose(y1, reference_forward(x1, params), atol=5e-2, rtol=5e-2)

    # Unaligned batch with a multi-step grid and a partial last tile
    # (exercises the no-padding cdiv path: 300 rows -> 4 tiles of 80 rows).
    x2 = jax.random.normal(k_x2, (300, in_dim), dtype=jnp.float32)
    y2 = jax.block_until_ready(value_network_forward(x2, params, batch_tile=128))
    assert y2.shape == (300,)
    assert jnp.allclose(y2, reference_forward(x2, params), atol=5e-2, rtol=5e-2)

    print("KERNEL_OK")
</pallas_src>

<mosaic_0001>
module attributes {stable_mosaic.version = 11 : i64} {
  func.func @value_net_kernel(%arg0: i32, %arg1: memref<8x128xf32, #tpu.memory_space<vmem>>, %arg2: memref<128x128xbf16, #tpu.memory_space<vmem>>, %arg3: memref<1x128xbf16, #tpu.memory_space<vmem>>, %arg4: memref<128x128xbf16, #tpu.memory_space<vmem>>, %arg5: memref<1x128xbf16, #tpu.memory_space<vmem>>, %arg6: memref<128x128xbf16, #tpu.memory_space<vmem>>, %arg7: memref<1x128xbf16, #tpu.memory_space<vmem>>, %arg8: memref<1x128xf32, #tpu.memory_space<vmem>>, %arg9: memref<1x1xf32, #tpu.memory_space<vmem>>, %arg10: memref<8x1xf32, #tpu.memory_space<vmem>>) attributes {dimension_semantics = [#tpu.dimension_semantics<parallel>], iteration_bounds = array<i64: 1>, scalar_prefetch = 0 : i64, scratch_operands = 0 : i64, tpu.core_type = #tpu.core_type<tc>, window_params = [{transform_indices = @transform_0, window_bounds = array<i64: 8, 128>}, {pipeline_mode = #tpu.pipeline_mode<synchronous>, transform_indices = @transform_1, window_bounds = array<i64: 128, 128>}, {pipeline_mode = #tpu.pipeline_mode<synchronous>, transform_indices = @transform_2, window_bounds = array<i64: 1, 128>}, {pipeline_mode = #tpu.pipeline_mode<synchronous>, transform_indices = @transform_3, window_bounds = array<i64: 128, 128>}, {pipeline_mode = #tpu.pipeline_mode<synchronous>, transform_indices = @transform_4, window_bounds = array<i64: 1, 128>}, {pipeline_mode = #tpu.pipeline_mode<synchronous>, transform_indices = @transform_5, window_bounds = array<i64: 128, 128>}, {pipeline_mode = #tpu.pipeline_mode<synchronous>, transform_indices = @transform_6, window_bounds = array<i64: 1, 128>}, {pipeline_mode = #tpu.pipeline_mode<synchronous>, transform_indices = @transform_7, window_bounds = array<i64: 1, 128>}, {pipeline_mode = #tpu.pipeline_mode<synchronous>, transform_indices = @transform_8, window_bounds = array<i64: 1, 1>}, {transform_indices = @transform_9, window_bounds = array<i64: 8, 1>}]} {
    %c0 = arith.constant 0 : index
    %c0_0 = arith.constant 0 : index
    %0 = vector.load %arg1[%c0, %c0_0] : memref<8x128xf32, #tpu.memory_space<vmem>>, vector<8x128xf32>
    %1 = arith.truncf %0 : vector<8x128xf32> to vector<8x128xbf16>
    %c0_1 = arith.constant 0 : index
    %c0_2 = arith.constant 0 : index
    %2 = vector.load %arg2[%c0_1, %c0_2] : memref<128x128xbf16, #tpu.memory_space<vmem>>, vector<128x128xbf16>
    %cst = arith.constant dense<0.000000e+00> : vector<8x128xf32>
    %3 = tpu.matmul %1, %2, %cst {dimension_numbers = #tpu.dot_dimension_numbers<[1], [0], [0], [1], [0, 0, 1, 1], [], []>} : vector<8x128xbf16>, vector<128x128xbf16>, vector<8x128xf32> -> vector<8x128xf32>
    %4 = arith.truncf %3 : vector<8x128xf32> to vector<8x128xbf16>
    %c0_3 = arith.constant 0 : index
    %c0_4 = arith.constant 0 : index
    %5 = vector.load %arg3[%c0_3, %c0_4] : memref<1x128xbf16, #tpu.memory_space<vmem>>, vector<1x128xbf16>
    %6 = vector.broadcast %5 : vector<1x128xbf16> to vector<8x128xbf16>
    %7 = arith.addf %4, %6 : vector<8x128xbf16>
    %cst_5 = arith.constant 1.000980e-01 : bf16
    %8 = vector.broadcast %cst_5 : bf16 to vector<8x128xbf16>
    %9 = arith.mulf %7, %8 : vector<8x128xbf16>
    %10 = arith.maximumf %7, %9 : vector<8x128xbf16>
    %c0_6 = arith.constant 0 : index
    %c0_7 = arith.constant 0 : index
    %11 = vector.load %arg4[%c0_6, %c0_7] : memref<128x128xbf16, #tpu.memory_space<vmem>>, vector<128x128xbf16>
    %cst_8 = arith.constant dense<0.000000e+00> : vector<8x128xf32>
    %12 = tpu.matmul %10, %11, %cst_8 {dimension_numbers = #tpu.dot_dimension_numbers<[1], [0], [0], [1], [0, 0, 1, 1], [], []>} : vector<8x128xbf16>, vector<128x128xbf16>, vector<8x128xf32> -> vector<8x128xf32>
    %13 = arith.truncf %12 : vector<8x128xf32> to vector<8x128xbf16>
    %c0_9 = arith.constant 0 : index
    %c0_10 = arith.constant 0 : index
    %14 = vector.load %arg5[%c0_9, %c0_10] : memref<1x128xbf16, #tpu.memory_space<vmem>>, vector<1x128xbf16>
    %15 = vector.broadcast %14 : vector<1x128xbf16> to vector<8x128xbf16>
    %16 = arith.addf %13, %15 : vector<8x128xbf16>
    %cst_11 = arith.constant 1.000980e-01 : bf16
    %17 = vector.broadcast %cst_11 : bf16 to vector<8x128xbf16>
    %18 = arith.mulf %16, %17 : vector<8x128xbf16>
    %19 = arith.maximumf %16, %18 : vector<8x128xbf16>
    %c0_12 = arith.constant 0 : index
    %c0_13 = arith.constant 0 : index
    %20 = vector.load %arg6[%c0_12, %c0_13] : memref<128x128xbf16, #tpu.memory_space<vmem>>, vector<128x128xbf16>
    %cst_14 = arith.constant dense<0.000000e+00> : vector<8x128xf32>
    %21 = tpu.matmul %19, %20, %cst_14 {dimension_numbers = #tpu.dot_dimension_numbers<[1], [0], [0], [1], [0, 0, 1, 1], [], []>} : vector<8x128xbf16>, vector<128x128xbf16>, vector<8x128xf32> -> vector<8x128xf32>
    %22 = arith.truncf %21 : vector<8x128xf32> to vector<8x128xbf16>
    %c0_15 = arith.constant 0 : index
    %c0_16 = arith.constant 0 : index
    %23 = vector.load %arg7[%c0_15, %c0_16] : memref<1x128xbf16, #tpu.memory_space<vmem>>, vector<1x128xbf16>
    %24 = vector.broadcast %23 : vector<1x128xbf16> to vector<8x128xbf16>
    %25 = arith.addf %22, %24 : vector<8x128xbf16>
    %cst_17 = arith.constant 1.000980e-01 : bf16
    %26 = vector.broadcast %cst_17 : bf16 to vector<8x128xbf16>
    %27 = arith.mulf %25, %26 : vector<8x128xbf16>
    %28 = arith.maximumf %25, %27 : vector<8x128xbf16>
    %c0_18 = arith.constant 0 : index
    %c0_19 = arith.constant 0 : index
    %29 = vector.load %arg8[%c0_18, %c0_19] : memref<1x128xf32, #tpu.memory_space<vmem>>, vector<1x128xf32>
    %30 = arith.extf %28 : vector<8x128xbf16> to vector<8x128xf32>
    %31 = vector.broadcast %29 : vector<1x128xf32> to vector<8x128xf32>
    %32 = arith.mulf %30, %31 : vector<8x128xf32>
    %cst_20 = arith.constant dense<0.000000e+00> : vector<8xf32>
    %33 = vector.multi_reduction <add>, %32, %cst_20 [1] : vector<8x128xf32> to vector<8xf32>
    %34 = vector.shape_cast %33 : vector<8xf32> to vector<8x1xf32>
    %c0_21 = arith.constant 0 : index
    %c0_22 = arith.constant 0 : index
    %35 = vector.load %arg9[%c0_21, %c0_22] : memref<1x1xf32, #tpu.memory_space<vmem>>, vector<1x1xf32>
    %36 = vector.broadcast %35 : vector<1x1xf32> to vector<8x1xf32>
    %37 = arith.addf %34, %36 : vector<8x1xf32>
    %c0_23 = arith.constant 0 : index
    %c0_24 = arith.constant 0 : index
    %38 = vector.load %arg10[%c0_23, %c0_24] : memref<8x1xf32, #tpu.memory_space<vmem>>, vector<8x1xf32>
    tpu.vector_store %arg10[%c0_23, %c0_24], %37 {strides = array<i32>} : memref<8x1xf32, #tpu.memory_space<vmem>>, vector<8x1xf32>,
    return
  }
  func.func @transform_0(%arg0: i32) -> (i32, i32) {
    %c0_i32 = arith.constant 0 : i32
    %c0_i32_0 = arith.constant 0 : i32
    return %arg0, %c0_i32 : i32, i32
  }
  func.func @transform_1(%arg0: i32) -> (i32, i32) {
    %c0_i32 = arith.constant 0 : i32
    %c0_i32_0 = arith.constant 0 : i32
    %c0_i32_1 = arith.constant 0 : i32
    return %c0_i32, %c0_i32_0 : i32, i32
  }
  func.func @transform_2(%arg0: i32) -> (i32, i32) {
    %c0_i32 = arith.constant 0 : i32
    %c0_i32_0 = arith.constant 0 : i32
    %c0_i32_1 = arith.constant 0 : i32
    return %c0_i32, %c0_i32_0 : i32, i32
  }
  func.func @transform_3(%arg0: i32) -> (i32, i32) {
    %c0_i32 = arith.constant 0 : i32
    %c0_i32_0 = arith.constant 0 : i32
    %c0_i32_1 = arith.constant 0 : i32
    return %c0_i32, %c0_i32_0 : i32, i32
  }
  func.func @transform_4(%arg0: i32) -> (i32, i32) {
    %c0_i32 = arith.constant 0 : i32
    %c0_i32_0 = arith.constant 0 : i32
    %c0_i32_1 = arith.constant 0 : i32
    return %c0_i32, %c0_i32_0 : i32, i32
  }
  func.func @transform_5(%arg0: i32) -> (i32, i32) {
    %c0_i32 = arith.constant 0 : i32
    %c0_i32_0 = arith.constant 0 : i32
    %c0_i32_1 = arith.constant 0 : i32
    return %c0_i32, %c0_i32_0 : i32, i32
  }
  func.func @transform_6(%arg0: i32) -> (i32, i32) {
    %c0_i32 = arith.constant 0 : i32
    %c0_i32_0 = arith.constant 0 : i32
    %c0_i32_1 = arith.constant 0 : i32
    return %c0_i32, %c0_i32_0 : i32, i32
  }
  func.func @transform_7(%arg0: i32) -> (i32, i32) {
    %c0_i32 = arith.constant 0 : i32
    %c0_i32_0 = arith.constant 0 : i32
    %c0_i32_1 = arith.constant 0 : i32
    return %c0_i32, %c0_i32_0 : i32, i32
  }
  func.func @transform_8(%arg0: i32) -> (i32, i32) {
    %c0_i32 = arith.constant 0 : i32
    %c0_i32_0 = arith.constant 0 : i32
    %c0_i32_1 = arith.constant 0 : i32
    return %c0_i32, %c0_i32_0 : i32, i32
  }
  func.func @transform_9(%arg0: i32) -> (i32, i32) {
    %c0_i32 = arith.constant 0 : i32
    %c0_i32_0 = arith.constant 0 : i32
    return %arg0, %c0_i32 : i32, i32
  }
}

</mosaic_0001>

<llo_original>
// kernel: tpu_custom_call.1
$region0: #{tpu_custom_call.1}
  #allocation0 [shape = 'u32[]', space=smem, size = 0x4, offset = 0x4, fixed_abs, tag = 'smem constant byte address 0x4 - core index']
  #allocation1 [shape = 'u32[144,128]{1,0:T(1,128)}', space=vmem, size = 0x12000, scoped, tag = 'internal scratch']
  #allocation2 [shape = 'f32[1,1]{1,0:T(1,128)S(1)}', space=vmem, size = 0x200, scoped, tag = 'scoped memory for tpu_custom_call.1']
  %s0 = inlined_call_operand.hbm [shape: f32[8,128], index: 0, kind: input, shape index: {}]
  %s1 = inlined_call_operand.hbm [shape: bf16[128,128], index: 1, kind: input, shape index: {}]
  %s2 = inlined_call_operand.vmem [shape: bf16[1,128], index: 2, kind: input, shape index: {}]
  %s3 = inlined_call_operand.hbm [shape: bf16[128,128], index: 3, kind: input, shape index: {}]
  %s4 = inlined_call_operand.vmem [shape: bf16[1,128], index: 4, kind: input, shape index: {}]
  %s5 = inlined_call_operand.hbm [shape: bf16[128,128], index: 5, kind: input, shape index: {}]
  %s6 = inlined_call_operand.vmem [shape: bf16[1,128], index: 6, kind: input, shape index: {}]
  %s7 = inlined_call_operand.vmem [shape: f32[1,128], index: 7, kind: input, shape index: {}]
  %s8 = inlined_call_operand.<no memory space> [shape: f32[1,1], index: 8, kind: input, shape index: {}]
  %s9 = inlined_call_operand.vmem [shape: f32[8,1], index: 9, kind: output, shape index: {}]
  %s10 = sld [smem:[#allocation0]]
  $region62: #{tpu_custom_call.1} parent=0
    _
  %s12 = ssub.s32 1, %s10
  %s13 = scalar_select 0, %s12, %s10
  %v14 = vstv %s8
  %15 = vst [vmem:[#allocation2] sm:$0x1] %v14
  $region1: #{tpu_custom_call.1} parent=0
    #allocation3 [shape = 'u8[4096]{0}', space=vmem, size = 0x1000, scoped, tag = 'input window, operand 0, single buffered']
    #allocation4 [shape = 's32[1]{0}', space=sflag, size = 0x4, scoped, tag = 'scoped memory for tpu_custom_call.1']
    #allocation5 [shape = 'u8[32768]{0}', space=vmem, size = 0x8000, scoped, tag = 'input window, operand 1, single buffered']
    #allocation6 [shape = 's32[1]{0}', space=sflag, size = 0x4, scoped, tag = 'scoped memory for tpu_custom_call.1']
    #allocation7 [shape = 'u8[32768]{0}', space=vmem, size = 0x8000, scoped, tag = 'input window, operand 3, single buffered']
    #allocation8 [shape = 'u8[32768]{0}', space=vmem, size = 0x8000, scoped, tag = 'input window, operand 5, single buffered']
    #allocation9 [shape = 's32[1]{0}', space=sflag, size = 0x4, scoped, tag = 'scoped memory for tpu_custom_call.1']
    %16 = vsyncpa [#allocation4], 0
    %17 = vsyncpa [#allocation6], 0
    %18 = vsyncpa [#allocation9], 0
    // Predicated region
    $region2: #{tpu_custom_call.1} parent=1 // pred_check
      _
    $region3: #{tpu_custom_call.1} parent=1 // pred_check_branch
      %20 = sbr.rel (0) target = $region5
    $region4: #{tpu_custom_call.1} parent=1 // pred_region
      %s22 = ssub.s32 128, 128
      %23 = vsyncadd [#allocation4], %s22
      %s25 = sshll.u32 [#allocation3], 4
      %s26 = int_to_ptr.vmem [resolvable:$true] %s25
      %28 = dma.hbm_to_vmem [thread:$0]  %s0, 128, %s26, [#allocation4]
    $region5: #{tpu_custom_call.1} parent=1 // pred_fallthru
      _
    // Predicated region
    $region6: #{tpu_custom_call.1} parent=1 // pred_check
      _
    $region7: #{tpu_custom_call.1} parent=1 // pred_check_branch
      %30 = sbr.rel (0) target = $region9
    $region8: #{tpu_custom_call.1} parent=1 // pred_region
      %s32 = ssub.s32 1024, 1024
      %33 = vsyncadd [#allocation6], %s32
      %s34 = sshll.u32 [#allocation5], 4
      %s35 = int_to_ptr.vmem [resolvable:$true] %s34
      %40 = dma.hbm_to_vmem [thread:$0]  %s1, 1024, %s35, [#allocation6], 64, 64, 4
    $region9: #{tpu_custom_call.1} parent=1 // pred_fallthru
      _
    // Predicated region
    $region10: #{tpu_custom_call.1} parent=1 // pred_check
      _
    $region11: #{tpu_custom_call.1} parent=1 // pred_check_branch
      %42 = sbr.rel (0) target = $region13
    $region12: #{tpu_custom_call.1} parent=1 // pred_region
      _
    $region13: #{tpu_custom_call.1} parent=1 // pred_fallthru
      _
    // Predicated region
    $region14: #{tpu_custom_call.1} parent=1 // pred_check
      _
    $region15: #{tpu_custom_call.1} parent=1 // pred_check_branch
      %44 = sbr.rel (0) target = $region17
    $region16: #{tpu_custom_call.1} parent=1 // pred_region
      %s46 = ssub.s32 1024, 1024
      %47 = vsyncadd [#allocation6], %s46
      %s48 = sshll.u32 [#allocation7], 4
      %s49 = int_to_ptr.vmem [resolvable:$true] %s48
      %54 = dma.hbm_to_vmem [thread:$0]  %s3, 1024, %s49, [#allocation6], 64, 64, 4
    $region17: #{tpu_custom_call.1} parent=1 // pred_fallthru
      _
    // Predicated region
    $region18: #{tpu_custom_call.1} parent=1 // pred_check
      _
    $region19: #{tpu_custom_call.1} parent=1 // pred_check_branch
      %56 = sbr.rel (0) target = $region21
    $region20: #{tpu_custom_call.1} parent=1 // pred_region
      _
    $region21: #{tpu_custom_call.1} parent=1 // pred_fallthru
      _
    // Predicated region
    $region22: #{tpu_custom_call.1} parent=1 // pred_check
      _
    $region23: #{tpu_custom_call.1} parent=1 // pred_check_branch
      %58 = sbr.rel (0) target = $region25
    $region24: #{tpu_custom_call.1} parent=1 // pred_region
      %s60 = ssub.s32 1024, 1024
      %61 = vsyncadd [#allocation9], %s60
      %s62 = sshll.u32 [#allocation8], 4
      %s63 = int_to_ptr.vmem [resolvable:$true] %s62
      %68 = dma.hbm_to_vmem [thread:$0]  %s5, 1024, %s63, [#allocation9], 64, 64, 4
    $region25: #{tpu_custom_call.1} parent=1 // pred_fallthru
      _
    // Predicated region
    $region26: #{tpu_custom_call.1} parent=1 // pred_check
      _
    $region27: #{tpu_custom_call.1} parent=1 // pred_check_branch
      %70 = sbr.rel (0) target = $region29
    $region28: #{tpu_custom_call.1} parent=1 // pred_region
      _
    $region29: #{tpu_custom_call.1} parent=1 // pred_fallthru
      _
    // Predicated region
    $region30: #{tpu_custom_call.1} parent=1 // pred_check
      _
    $region31: #{tpu_custom_call.1} parent=1 // pred_check_branch
      %72 = sbr.rel (0) target = $region33
    $region32: #{tpu_custom_call.1} parent=1 // pred_region
      _
    $region33: #{tpu_custom_call.1} parent=1 // pred_fallthru
      _
    // Predicated region
    $region34: #{tpu_custom_call.1} parent=1 // pred_check
      _
    $region35: #{tpu_custom_call.1} parent=1 // pred_check_branch
      %74 = sbr.rel (0) target = $region37
    $region36: #{tpu_custom_call.1} parent=1 // pred_region
      _
    $region37: #{tpu_custom_call.1} parent=1 // pred_fallthru
      _
    // Predicated region
    $region38: #{tpu_custom_call.1} parent=1 // pred_check
      _
    $region39: #{tpu_custom_call.1} parent=1 // pred_check_branch
      %76 = sbr.rel (0) target = $region41
    $region40: #{tpu_custom_call.1} parent=1 // pred_region
      %77 = dma.done [#allocation4], 128
    $region41: #{tpu_custom_call.1} parent=1 // pred_fallthru
      _
    // Predicated region
    $region42: #{tpu_custom_call.1} parent=1 // pred_check
      _
    $region43: #{tpu_custom_call.1} parent=1 // pred_check_branch
      %79 = sbr.rel (0) target = $region45
    $region44: #{tpu_custom_call.1} parent=1 // pred_region
      %80 = dma.done [#allocation6], 1024
    $region45: #{tpu_custom_call.1} parent=1 // pred_fallthru
      _
    // Predicated region
    $region46: #{tpu_custom_call.1} parent=1 // pred_check
      _
    $region47: #{tpu_custom_call.1} parent=1 // pred_check_branch
      %82 = sbr.rel (0) target = $region49
    $region48: #{tpu_custom_call.1} parent=1 // pred_region
      %83 = dma.done [#allocation6], 1024
    $region49: #{tpu_custom_call.1} parent=1 // pred_fallthru
      _
    // Predicated region
    $region50: #{tpu_custom_call.1} parent=1 // pred_check
      _
    $region51: #{tpu_custom_call.1} parent=1 // pred_check_branch
      %85 = sbr.rel (0) target = $region53
    $region52: #{tpu_custom_call.1} parent=1 // pred_region
      %86 = dma.done [#allocation9], 1024
    $region53: #{tpu_custom_call.1} parent=1 // pred_fallthru
      _
    %v89 = vld [vmem:[#allocation3] sm:$0xff]
    %v90 = vpack.c.bf16 %v89, %v89
    %v91 = vld [vmem:[#allocation5] sm:$0xf]
    %v92 = vld [vmem:[#allocation5 + $0x4] sm:$0xf]
    %v93 = vld [vmem:[#allocation5 + $0x8] sm:$0xf]
    %v94 = vld [vmem:[#allocation5 + $0xc] sm:$0xf]
    %v95 = vld [vmem:[#allocation5 + $0x10] sm:$0xf]
    %v96 = vld [vmem:[#allocation5 + $0x14] sm:$0xf]
    %v97 = vld [vmem:[#allocation5 + $0x18] sm:$0xf]
    %v98 = vld [vmem:[#allocation5 + $0x1c] sm:$0xf]
    %v99 = vld [vmem:[#allocation5 + $0x20] sm:$0xf]
    %v100 = vld [vmem:[#allocation5 + $0x24] sm:$0xf]
    %v101 = vld [vmem:[#allocation5 + $0x28] sm:$0xf]
    %v102 = vld [vmem:[#allocation5 + $0x2c] sm:$0xf]
    %v103 = vld [vmem:[#allocation5 + $0x30] sm:$0xf]
    %v104 = vld [vmem:[#allocation5 + $0x34] sm:$0xf]
    %v105 = vld [vmem:[#allocation5 + $0x38] sm:$0xf]
    %v106 = vld [vmem:[#allocation5 + $0x3c] sm:$0xf]
    %v123 = vunpack.c.l.b16 %v91
    %v124 = vunpack.c.l.b16 %v92
    %v125 = vunpack.c.l.b16 %v93
    %v126 = vunpack.c.l.b16 %v94
    %v127 = vunpack.c.l.b16 %v95
    %v128 = vunpack.c.l.b16 %v96
    %v129 = vunpack.c.l.b16 %v97
    %v130 = vunpack.c.l.b16 %v98
    %v131 = vunpack.c.l.b16 %v99
    %v132 = vunpack.c.l.b16 %v100
    %v133 = vunpack.c.l.b16 %v101
    %v134 = vunpack.c.l.b16 %v102
    %v135 = vunpack.c.l.b16 %v103
    %v136 = vunpack.c.l.b16 %v104
    %v137 = vunpack.c.l.b16 %v105
    %v138 = vunpack.c.l.b16 %v106
    %v139 = vpack.c.b16 %v124, %v123
    %v140 = vpack.c.b16 %v126, %v125
    %v141 = vpack.c.b16 %v128, %v127
    %v142 = vpack.c.b16 %v130, %v129
    %v143 = vpack.c.b16 %v132, %v131
    %v144 = vpack.c.b16 %v134, %v133
    %v145 = vpack.c.b16 %v136, %v135
    %v146 = vpack.c.b16 %v138, %v137
    %155 = vmatprep.subr.bf16.mxu0 0
    %156 = vmatpush1.bf16.msra.mxu0 %v139
    %157 = vmatprep.subr.bf16.mxu0 0
    %158 = vmatpush1.bf16.msra.mxu0 %v140
    %159 = vmatprep.subr.bf16.mxu0 0
    %160 = vmatpush1.bf16.msra.mxu0 %v141
    %161 = vmatprep.subr.bf16.mxu0 0
    %162 = vmatpush1.bf16.msra.mxu0 %v142
    %163 = vmatprep.subr.bf16.mxu0 0
    %164 = vmatpush1.bf16.msra.mxu0 %v143
    %165 = vmatprep.subr.bf16.mxu0 0
    %166 = vmatpush1.bf16.msra.mxu0 %v144
    %167 = vmatprep.subr.bf16.mxu0 0
    %168 = vmatpush1.bf16.msra.mxu0 %v145
    %169 = vmatprep.subr.bf16.mxu0 0
    %170 = vmatpush1.bf16.msra.mxu0 %v146
    %171 = vmatprep.subr.bf16.mxu0 0
    %172 = vmatpush1.bf16.msra.mxu0 0
    %173 = vmatprep.subr.bf16.mxu0 0
    %174 = vmatpush1.bf16.msra.mxu0 0
    %175 = vmatprep.subr.bf16.mxu0 0
    %176 = vmatpush1.bf16.msra.mxu0 0
    %177 = vmatprep.subr.bf16.mxu0 0
    %178 = vmatpush1.bf16.msra.mxu0 0
    %179 = vmatprep.subr.bf16.mxu0 0
    %180 = vmatpush1.bf16.msra.mxu0 0
    %181 = vmatprep.subr.bf16.mxu0 0
    %182 = vmatpush1.bf16.msra.mxu0 0
    %183 = vmatprep.subr.bf16.mxu0 0
    %184 = vmatpush1.bf16.msra.mxu0 0
    %185 = vmatprep.subr.bf16.mxu0 0
    %186 = vmatpush1.bf16.msra.mxu0 0
    %187 = vmatprep.mubr.bf16.mxu0 0
    %188 = vmatmul.mubr.bf16.gmra.mrb[0].mxu0 %v90
    %v189 = vpop.f32.mrb[0].mxu0
    %v190 = vadd.f32 0.0, %v189
    %v191 = vpop.f32.mrb[0].mxu0
    %v192 = vpop.f32.mrb[0].mxu0
    %v193 = vpop.f32.mrb[0].mxu0
    %194 = vdwg.mxu0
    %v195 = vpack.c.bf16 %v190, %v190
    %v196 = vld [vmem:[%s2] sm:$0x1]
    %v198 = vpack.i.b16 %v196, %v196
    %v200 = vlaneseq
    %v201 = vshrl.u32 %v200, 7
    %v202 = vsub.s32 0, %v201
    %v203 = vrot.slane %v198, %v202
    %v204 = vadd.bf16 %v195, %v203
    %v205 = vmul.bf16 %v204, 1036860877
    %v206 = vmax.bf16 %v204, %v205
    %v207 = vld [vmem:[#allocation7] sm:$0xf]
    %v208 = vld [vmem:[#allocation7 + $0x4] sm:$0xf]
    %v209 = vld [vmem:[#allocation7 + $0x8] sm:$0xf]
    %v210 = vld [vmem:[#allocation7 + $0xc] sm:$0xf]
    %v211 = vld [vmem:[#allocation7 + $0x10] sm:$0xf]
    %v212 = vld [vmem:[#allocation7 + $0x14] sm:$0xf]
    %v213 = vld [vmem:[#allocation7 + $0x18] sm:$0xf]
    %v214 = vld [vmem:[#allocation7 + $0x1c] sm:$0xf]
    %v215 = vld [vmem:[#allocation7 + $0x20] sm:$0xf]
    %v216 = vld [vmem:[#allocation7 + $0x24] sm:$0xf]
    %v217 = vld [vmem:[#allocation7 + $0x28] sm:$0xf]
    %v218 = vld [vmem:[#allocation7 + $0x2c] sm:$0xf]
    %v219 = vld [vmem:[#allocation7 + $0x30] sm:$0xf]
    %v220 = vld [vmem:[#allocation7 + $0x34] sm:$0xf]
    %v221 = vld [vmem:[#allocation7 + $0x38] sm:$0xf]
    %v222 = vld [vmem:[#allocation7 + $0x3c] sm:$0xf]
    %v239 = vunpack.c.l.b16 %v207
    %v240 = vunpack.c.l.b16 %v208
    %v241 = vunpack.c.l.b16 %v209
    %v242 = vunpack.c.l.b16 %v210
    %v243 = vunpack.c.l.b16 %v211
    %v244 = vunpack.c.l.b16 %v212
    %v245 = vunpack.c.l.b16 %v213
    %v246 = vunpack.c.l.b16 %v214
    %v247 = vunpack.c.l.b16 %v215
    %v248 = vunpack.c.l.b16 %v216
    %v249 = vunpack.c.l.b16 %v217
    %v250 = vunpack.c.l.b16 %v218
    %v251 = vunpack.c.l.b16 %v219
    %v252 = vunpack.c.l.b16 %v220
    %v253 = vunpack.c.l.b16 %v221
    %v254 = vunpack.c.l.b16 %v222
    %v255 = vpack.c.b16 %v240, %v239
    %v256 = vpack.c.b16 %v242, %v241
    %v257 = vpack.c.b16 %v244, %v243
    %v258 = vpack.c.b16 %v246, %v245
    %v259 = vpack.c.b16 %v248, %v247
    %v260 = vpack.c.b16 %v250, %v249
    %v261 = vpack.c.b16 %v252, %v251
    %v262 = vpack.c.b16 %v254, %v253
    %271 = vmatprep.subr.bf16.mxu0 0
    %272 = vmatpush1.bf16.msra.mxu0 %v255
    %273 = vmatprep.subr.bf16.mxu0 0
    %274 = vmatpush1.bf16.msra.mxu0 %v256
    %275 = vmatprep.subr.bf16.mxu0 0
    %276 = vmatpush1.bf16.msra.mxu0 %v257
    %277 = vmatprep.subr.bf16.mxu0 0
    %278 = vmatpush1.bf16.msra.mxu0 %v258
    %279 = vmatprep.subr.bf16.mxu0 0
    %280 = vmatpush1.bf16.msra.mxu0 %v259
    %281 = vmatprep.subr.bf16.mxu0 0
    %282 = vmatpush1.bf16.msra.mxu0 %v260
    %283 = vmatprep.subr.bf16.mxu0 0
    %284 = vmatpush1.bf16.msra.mxu0 %v261
    %285 = vmatprep.subr.bf16.mxu0 0
    %286 = vmatpush1.bf16.msra.mxu0 %v262
    %287 = vmatprep.subr.bf16.mxu0 0
    %288 = vmatpush1.bf16.msra.mxu0 0
    %289 = vmatprep.subr.bf16.mxu0 0
    %290 = vmatpush1.bf16.msra.mxu0 0
    %291 = vmatprep.subr.bf16.mxu0 0
    %292 = vmatpush1.bf16.msra.mxu0 0
    %293 = vmatprep.subr.bf16.mxu0 0
    %294 = vmatpush1.bf16.msra.mxu0 0
    %295 = vmatprep.subr.bf16.mxu0 0
    %296 = vmatpush1.bf16.msra.mxu0 0
    %297 = vmatprep.subr.bf16.mxu0 0
    %298 = vmatpush1.bf16.msra.mxu0 0
    %299 = vmatprep.subr.bf16.mxu0 0
    %300 = vmatpush1.bf16.msra.mxu0 0
    %301 = vmatprep.subr.bf16.mxu0 0
    %302 = vmatpush1.bf16.msra.mxu0 0
    %303 = vmatprep.mubr.bf16.mxu0 0
    %304 = vmatmul.mubr.bf16.gmra.mrb[0].mxu0 %v206
    %v305 = vpop.f32.mrb[0].mxu0
    %v306 = vadd.f32 0.0, %v305
    %v307 = vpop.f32.mrb[0].mxu0
    %v308 = vpop.f32.mrb[0].mxu0
    %v309 = vpop.f32.mrb[0].mxu0
    %310 = vdwg.mxu0
    %v311 = vpack.c.bf16 %v306, %v306
    %v312 = vld [vmem:[%s4] sm:$0x1]
    %v314 = vpack.i.b16 %v312, %v312
    %v316 = vlaneseq
    %v317 = vshrl.u32 %v316, 7
    %v318 = vsub.s32 0, %v317
    %v319 = vrot.slane %v314, %v318
    %v320 = vadd.bf16 %v311, %v319
    %v321 = vmul.bf16 %v320, 1036860877
    %v322 = vmax.bf16 %v320, %v321
    %v323 = vld [vmem:[#allocation8] sm:$0xf]
    %v324 = vld [vmem:[#allocation8 + $0x4] sm:$0xf]
    %v325 = vld [vmem:[#allocation8 + $0x8] sm:$0xf]
    %v326 = vld [vmem:[#allocation8 + $0xc] sm:$0xf]
    %v327 = vld [vmem:[#allocation8 + $0x10] sm:$0xf]
    %v328 = vld [vmem:[#allocation8 + $0x14] sm:$0xf]
    %v329 = vld [vmem:[#allocation8 + $0x18] sm:$0xf]
    %v330 = vld [vmem:[#allocation8 + $0x1c] sm:$0xf]
    %v331 = vld [vmem:[#allocation8 + $0x20] sm:$0xf]
    %v332 = vld [vmem:[#allocation8 + $0x24] sm:$0xf]
    %v333 = vld [vmem:[#allocation8 + $0x28] sm:$0xf]
    %v334 = vld [vmem:[#allocation8 + $0x2c] sm:$0xf]
    %v335 = vld [vmem:[#allocation8 + $0x30] sm:$0xf]
    %v336 = vld [vmem:[#allocation8 + $0x34] sm:$0xf]
    %v337 = vld [vmem:[#allocation8 + $0x38] sm:$0xf]
    %v338 = vld [vmem:[#allocation8 + $0x3c] sm:$0xf]
    %v355 = vunpack.c.l.b16 %v323
    %v356 = vunpack.c.l.b16 %v324
    %v357 = vunpack.c.l.b16 %v325
    %v358 = vunpack.c.l.b16 %v326
    %v359 = vunpack.c.l.b16 %v327
    %v360 = vunpack.c.l.b16 %v328
    %v361 = vunpack.c.l.b16 %v329
    %v362 = vunpack.c.l.b16 %v330
    %v363 = vunpack.c.l.b16 %v331
    %v364 = vunpack.c.l.b16 %v332
    %v365 = vunpack.c.l.b16 %v333
    %v366 = vunpack.c.l.b16 %v334
    %v367 = vunpack.c.l.b16 %v335
    %v368 = vunpack.c.l.b16 %v336
    %v369 = vunpack.c.l.b16 %v337
    %v370 = vunpack.c.l.b16 %v338
    %v371 = vpack.c.b16 %v356, %v355
    %v372 = vpack.c.b16 %v358, %v357
    %v373 = vpack.c.b16 %v360, %v359
    %v374 = vpack.c.b16 %v362, %v361
    %v375 = vpack.c.b16 %v364, %v363
    %v376 = vpack.c.b16 %v366, %v365
    %v377 = vpack.c.b16 %v368, %v367
    %v378 = vpack.c.b16 %v370, %v369
    %387 = vmatprep.subr.bf16.mxu0 0
    %388 = vmatpush1.bf16.msra.mxu0 %v371
    %389 = vmatprep.subr.bf16.mxu0 0
    %390 = vmatpush1.bf16.msra.mxu0 %v372
    %391 = vmatprep.subr.bf16.mxu0 0
    %392 = vmatpush1.bf16.msra.mxu0 %v373
    %393 = vmatprep.subr.bf16.mxu0 0
    %394 = vmatpush1.bf16.msra.mxu0 %v374
    %395 = vmatprep.subr.bf16.mxu0 0
    %396 = vmatpush1.bf16.msra.mxu0 %v375
    %397 = vmatprep.subr.bf16.mxu0 0
    %398 = vmatpush1.bf16.msra.mxu0 %v376
    %399 = vmatprep.subr.bf16.mxu0 0
    %400 = vmatpush1.bf16.msra.mxu0 %v377
    %401 = vmatprep.subr.bf16.mxu0 0
    %402 = vmatpush1.bf16.msra.mxu0 %v378
    %403 = vmatprep.subr.bf16.mxu0 0
    %404 = vmatpush1.bf16.msra.mxu0 0
    %405 = vmatprep.subr.bf16.mxu0 0
    %406 = vmatpush1.bf16.msra.mxu0 0
    %407 = vmatprep.subr.bf16.mxu0 0
    %408 = vmatpush1.bf16.msra.mxu0 0
    %409 = vmatprep.subr.bf16.mxu0 0
    %410 = vmatpush1.bf16.msra.mxu0 0
    %411 = vmatprep.subr.bf16.mxu0 0
    %412 = vmatpush1.bf16.msra.mxu0 0
    %413 = vmatprep.subr.bf16.mxu0 0
    %414 = vmatpush1.bf16.msra.mxu0 0
    %415 = vmatprep.subr.bf16.mxu0 0
    %416 = vmatpush1.bf16.msra.mxu0 0
    %417 = vmatprep.subr.bf16.mxu0 0
    %418 = vmatpush1.bf16.msra.mxu0 0
    %419 = vmatprep.mubr.bf16.mxu0 0
    %420 = vmatmul.mubr.bf16.gmra.mrb[0].mxu0 %v322
    %v421 = vpop.f32.mrb[0].mxu0
    %v422 = vadd.f32 0.0, %v421
    %v423 = vpop.f32.mrb[0].mxu0
    %v424 = vpop.f32.mrb[0].mxu0
    %v425 = vpop.f32.mrb[0].mxu0
    %426 = vdwg.mxu0
    %v427 = vpack.c.bf16 %v422, %v422
    %v428 = vld [vmem:[%s6] sm:$0x1]
    %v430 = vpack.i.b16 %v428, %v428
    %v432 = vlaneseq
    %v433 = vshrl.u32 %v432, 7
    %v434 = vsub.s32 0, %v433
    %v435 = vrot.slane %v430, %v434
    %v436 = vadd.bf16 %v427, %v435
    %v437 = vmul.bf16 %v436, 1036860877
    %v438 = vmax.bf16 %v436, %v437
    %v439 = vld [vmem:[%s7] sm:$0x1]
    %v440 = vunpack.c.l.bf16 %v438
    %v442 = vlaneseq
    %v443 = vshrl.u32 %v442, 7
    %v444 = vsub.s32 0, %v443
    %v445 = vrot.slane %v439, %v444
    %v447 = vmul.f32 %v440, %v445
    %448 = vadd.xlane.f32.xlu0 %v447
    %v449 = vpop.xlane.xlu0 %448
    %v450 = vld [vmem:[#allocation2] sm:$0x1]
    %v452 = vlaneseq
    %v453 = vshrl.u32 %v452, 7
    %v454 = vsub.s32 0, %v453
    %v455 = vrot.slane %v450, %v454
    %v457 = vadd.f32 %v449, %v455
    %vm458 = vcmask 7168
    %459 = vst.msk [vmem:[%s9] sm:$0xff] %vm458, %v457
    // Predicated region
    $region54: #{tpu_custom_call.1} parent=1 // pred_check
      _
    $region55: #{tpu_custom_call.1} parent=1 // pred_check_branch
      %461 = sbr.rel (0) target = $region57
    $region56: #{tpu_custom_call.1} parent=1 // pred_region
      _
    $region57: #{tpu_custom_call.1} parent=1 // pred_fallthru
      _
    // Predicated region
    $region58: #{tpu_custom_call.1} parent=1 // pred_check
      _
    $region59: #{tpu_custom_call.1} parent=1 // pred_check_branch
      %463 = sbr.rel (0) target = $region61
    $region60: #{tpu_custom_call.1} parent=1 // pred_region
      _
    $region61: #{tpu_custom_call.1} parent=1 // pred_fallthru
      _
    %464 = vsyncpa [#allocation4], 1
    %465 = vsyncpa [#allocation6], 1
    %466 = vsyncpa [#allocation9], 1

</llo_original>
